<compile_context>
chip_gen: v5e
topology: v5e:2x2
jax: 0.10.0
libtpu: 0.0.40
codegen_flags: <defaults>
</compile_context>

<pallas_src>
import functools

import jax
import jax.numpy as jnp
from jax.experimental import pallas as pl
from jax.experimental.pallas import tpu as pltpu


def _rmsnorm_kernel(x_ref, w_ref, o_ref, *, eps, inv_dim):
    # x_ref: (tile_rows, dim) block of the input (original dtype)
    # w_ref: (1, dim) precomputed (1 + weight) in f32, resident across steps
    # o_ref: (tile_rows, dim) output block (original dtype)
    xf = x_ref[...].astype(jnp.float32)                       # pass 1: cast
    ms = jnp.sum(xf * xf, axis=-1, keepdims=True) * inv_dim   # mean(x^2)
    inv = jax.lax.rsqrt(ms + eps)                             # EUP rsqrt
    # Pass 2 re-reads + re-casts the (cheaper, half-width) input tile instead
    # of reusing `xf`, so the full f32 copy need not stay live across the
    # reduction (avoids VMEM spill traffic for large tiles).
    o_ref[...] = (x_ref[...].astype(jnp.float32) * inv * w_ref[...]).astype(o_ref.dtype)


def _ceil_div(a: int, b: int) -> int:
    return -(-a // b)


def _round_up(a: int, b: int) -> int:
    return _ceil_div(a, b) * b


def _sublane_multiple(itemsize: int) -> int:
    # Sub-32-bit dtypes pack along sublanes: a bf16 vreg is [16, 128].
    if itemsize >= 4:
        return 8
    if itemsize == 2:
        return 16
    return 32


def _vmem_capacity_bytes() -> int:
    try:
        return int(pltpu.get_tpu_info().vmem_capacity_bytes)
    except Exception:
        # Conservative fallback: v7x only has 64 MiB per TensorCore; this is
        # safe (if undersized) on v5e/v6e as well.
        return 64 * 1024 * 1024


def _pick_tile_rows(rows: int, dim: int, itemsize: int):
    """Largest row tile that (a) is a sublane multiple, (b) fits the VMEM
    budget including double-buffered I/O tiles and compiler f32 temporaries,
    (c) keeps the grid even-ish / >= 2 steps when possible (v7x megacore)."""
    sub = _sublane_multiple(itemsize)
    vmem = _vmem_capacity_bytes()

    # Per-step working set, per row of tile:
    #   2 bufs * in tile + 2 bufs * out tile (original dtype)
    #   + ~1 row of f32 temporaries (the kernel avoids a live f32 tile copy).
    per_row_bytes = dim * (2 * 2 * itemsize + 4)
    budget = vmem // 2
    max_rows = max(sub, (budget // per_row_bytes) // sub * sub)
    tile = int(min(1024, max_rows))

    if tile >= rows:
        # Whole input fits in one tile: split into 2 steps when big enough so
        # v7x's two TensorCores both get work; otherwise one full block.
        if rows >= 2 * sub:
            tile = _round_up(_ceil_div(rows, 2), sub)
        else:
            tile = rows  # full-extent block is always a legal block shape
        return tile, vmem

    # Load-balance small odd grids across v7x's two TensorCores: bump the
    # step count to the next even number and shrink the tile accordingly.
    num_steps = _ceil_div(rows, tile)
    if num_steps % 2 == 1 and num_steps <= 9:
        num_steps += 1
        tile = _round_up(_ceil_div(rows, num_steps), sub)
    return tile, vmem


def gemma_rmsnorm(x, weight, eps=1e-6):
    """RMSNorm over the last axis of x, matching GemmaRMSNorm.forward."""
    orig_shape = x.shape
    dim = orig_shape[-1]
    rows = 1
    for s in orig_shape[:-1]:
        rows *= s

    x2d = x.reshape(rows, dim)
    # Fold the "+1" into the weight once (instead of once per grid step).
    w2d = (1.0 + weight.astype(jnp.float32)).reshape(1, dim)
    itemsize = jnp.dtype(x.dtype).itemsize

    tile_rows, vmem = _pick_tile_rows(rows, dim, itemsize)
    num_steps = pl.cdiv(rows, tile_rows)

    # Raise the scoped VMEM limit to cover the larger tiles, but stay below
    # physical VMEM (v7x only has 64 MiB per TensorCore).
    vmem_limit = int(min(96 * 1024 * 1024, (vmem * 3) // 4))

    kernel = functools.partial(_rmsnorm_kernel, eps=eps, inv_dim=1.0 / dim)

    cost = pl.CostEstimate(
        flops=4 * rows * dim,
        transcendentals=rows,
        bytes_accessed=rows * dim * 2 * itemsize + dim * 4,
    )

    out2d = pl.pallas_call(
        kernel,
        out_shape=jax.ShapeDtypeStruct((rows, dim), x.dtype),
        grid_spec=pltpu.PrefetchScalarGridSpec(
            num_scalar_prefetch=0,
            grid=(num_steps,),
            in_specs=[
                pl.BlockSpec((tile_rows, dim), lambda i: (i, 0)),
                pl.BlockSpec((1, dim), lambda i: (0, 0)),
            ],
            out_specs=pl.BlockSpec((tile_rows, dim), lambda i: (i, 0)),
        ),
        compiler_params=pltpu.CompilerParams(
            dimension_semantics=("parallel",),
            vmem_limit_bytes=vmem_limit,
        ),
        cost_estimate=cost,
    )(x2d, w2d)

    return out2d.reshape(orig_shape)


def gemma_rmsnorm_ref(x, weight, eps=1e-6):
    """Pure-JAX reference mirroring the PyTorch module exactly."""
    xf = x.astype(jnp.float32)
    out = xf * jax.lax.rsqrt(jnp.mean(xf * xf, axis=-1, keepdims=True) + eps)
    out = out * (1.0 + weight.astype(jnp.float32))
    return out.astype(x.dtype)


if __name__ == "__main__":
    key = jax.random.PRNGKey(0)
    batch, seq, hidden = 2, 8, 32
    # NOTE: production Gemma has hidden as a multiple of 128 (lane-dense
    # stores); hidden=32 here is just the small self-test shape.

    kx, kw = jax.random.split(key)
    x = jax.random.normal(kx, (batch, seq, hidden), dtype=jnp.bfloat16)
    # GemmaRMSNorm initializes weight to zeros; use a small deterministic
    # perturbation so the (1 + weight) path is actually exercised.
    weight = 0.01 * jax.random.normal(kw, (hidden,), dtype=jnp.float32)

    out = gemma_rmsnorm(x, weight, eps=1e-6)
    out = jax.block_until_ready(out)

    ref = gemma_rmsnorm_ref(x, weight, eps=1e-6)
    assert out.shape == x.shape and out.dtype == x.dtype
    assert jnp.allclose(out.astype(jnp.float32), ref.astype(jnp.float32),
                        atol=1e-2, rtol=1e-2)

    print("KERNEL_OK")
</pallas_src>

<mosaic_0001>
module attributes {stable_mosaic.version = 11 : i64} {
  func.func @_rmsnorm_kernel(%arg0: i32, %arg1: memref<16x32xbf16, #tpu.memory_space<vmem>>, %arg2: memref<1x32xf32, #tpu.memory_space<vmem>>, %arg3: memref<16x32xbf16, #tpu.memory_space<vmem>>) attributes {dimension_semantics = [#tpu.dimension_semantics<parallel>], iteration_bounds = array<i64: 1>, scalar_prefetch = 0 : i64, scratch_operands = 0 : i64, tpu.core_type = #tpu.core_type<tc>, window_params = [{transform_indices = @transform_0, window_bounds = array<i64: 16, 32>}, {pipeline_mode = #tpu.pipeline_mode<synchronous>, transform_indices = @transform_1, window_bounds = array<i64: 1, 32>}, {transform_indices = @transform_2, window_bounds = array<i64: 16, 32>}]} {
    %c0 = arith.constant 0 : index
    %c0_0 = arith.constant 0 : index
    %0 = vector.load %arg1[%c0, %c0_0] : memref<16x32xbf16, #tpu.memory_space<vmem>>, vector<16x32xbf16>
    %1 = arith.extf %0 : vector<16x32xbf16> to vector<16x32xf32>
    %2 = arith.mulf %1, %1 : vector<16x32xf32>
    %cst = arith.constant dense<0.000000e+00> : vector<16xf32>
    %3 = vector.multi_reduction <add>, %2, %cst [1] : vector<16x32xf32> to vector<16xf32>
    %4 = vector.shape_cast %3 : vector<16xf32> to vector<16x1xf32>
    %cst_1 = arith.constant 3.125000e-02 : f32
    %5 = vector.broadcast %cst_1 : f32 to vector<16x1xf32>
    %6 = arith.mulf %4, %5 : vector<16x1xf32>
    %cst_2 = arith.constant 9.99999997E-7 : f32
    %7 = vector.broadcast %cst_2 : f32 to vector<16x1xf32>
    %8 = arith.addf %6, %7 : vector<16x1xf32>
    %9 = math.rsqrt %8 : vector<16x1xf32>
    %c0_3 = arith.constant 0 : index
    %c0_4 = arith.constant 0 : index
    %10 = vector.load %arg1[%c0_3, %c0_4] : memref<16x32xbf16, #tpu.memory_space<vmem>>, vector<16x32xbf16>
    %11 = arith.extf %10 : vector<16x32xbf16> to vector<16x32xf32>
    %12 = vector.broadcast %9 : vector<16x1xf32> to vector<16x32xf32>
    %13 = arith.mulf %11, %12 : vector<16x32xf32>
    %c0_5 = arith.constant 0 : index
    %c0_6 = arith.constant 0 : index
    %14 = vector.load %arg2[%c0_5, %c0_6] : memref<1x32xf32, #tpu.memory_space<vmem>>, vector<1x32xf32>
    %15 = vector.broadcast %14 : vector<1x32xf32> to vector<16x32xf32>
    %16 = arith.mulf %13, %15 : vector<16x32xf32>
    %17 = arith.truncf %16 : vector<16x32xf32> to vector<16x32xbf16>
    %c0_7 = arith.constant 0 : index
    %c0_8 = arith.constant 0 : index
    %18 = vector.load %arg3[%c0_7, %c0_8] : memref<16x32xbf16, #tpu.memory_space<vmem>>, vector<16x32xbf16>
    tpu.vector_store %arg3[%c0_7, %c0_8], %17 {strides = array<i32>} : memref<16x32xbf16, #tpu.memory_space<vmem>>, vector<16x32xbf16>,
    return
  }
  func.func @transform_0(%arg0: i32) -> (i32, i32) {
    %c0_i32 = arith.constant 0 : i32
    %c0_i32_0 = arith.constant 0 : i32
    return %arg0, %c0_i32 : i32, i32
  }
  func.func @transform_1(%arg0: i32) -> (i32, i32) {
    %c0_i32 = arith.constant 0 : i32
    %c0_i32_0 = arith.constant 0 : i32
    %c0_i32_1 = arith.constant 0 : i32
    return %c0_i32, %c0_i32_0 : i32, i32
  }
  func.func @transform_2(%arg0: i32) -> (i32, i32) {
    %c0_i32 = arith.constant 0 : i32
    %c0_i32_0 = arith.constant 0 : i32
    return %arg0, %c0_i32 : i32, i32
  }
}

</mosaic_0001>

<llo_original>
// kernel: tpu_custom_call.1
$region0: #{tpu_custom_call.1}
  #allocation0 [shape = 'u32[]', space=smem, size = 0x4, offset = 0x4, fixed_abs, tag = 'smem constant byte address 0x4 - core index']
  #allocation1 [shape = 'u32[72,128]{1,0:T(1,128)}', space=vmem, size = 0x9000, scoped, tag = 'internal scratch']
  %s0 = inlined_call_operand.hbm [shape: bf16[16,32], index: 0, kind: input, shape index: {}]
  %s1 = inlined_call_operand.hbm [shape: f32[1,32], index: 1, kind: input, shape index: {}]
  %s2 = inlined_call_operand.hbm [shape: bf16[16,32], index: 2, kind: output, shape index: {}]
  %s3 = sld [smem:[#allocation0]]
  $region26: #{tpu_custom_call.1} parent=0
    _
  %s5 = ssub.s32 1, %s3
  %s6 = scalar_select 0, %s5, %s3
  $region1: #{tpu_custom_call.1} parent=0
    #allocation2 [shape = 'u8[4096]{0}', space=vmem, size = 0x1000, scoped, tag = 'input window, operand 0, single buffered']
    #allocation3 [shape = 's32[1]{0}', space=sflag, size = 0x4, scoped, tag = 'scoped memory for tpu_custom_call.1']
    #allocation4 [shape = 's32[1]{0}', space=sflag, size = 0x4, scoped, tag = 'scoped memory for tpu_custom_call.1']
    #allocation5 [shape = 'u8[512]{0}', space=vmem, size = 0x400, scoped, tag = 'input window, operand 1, single buffered']
    #allocation6 [shape = 's32[1]{0}', space=sflag, size = 0x4, scoped, tag = 'scoped memory for tpu_custom_call.1']
    #allocation7 [shape = 'u8[4096]{0}', space=vmem, size = 0x1000, scoped, tag = 'output window, operand 0, single buffered']
    %7 = vsyncpa [#allocation3], 0
    %8 = vsyncpa [#allocation6], 0
    %9 = vsyncpa [#allocation4], 0
    // Predicated region
    $region2: #{tpu_custom_call.1} parent=1 // pred_check
      _
    $region3: #{tpu_custom_call.1} parent=1 // pred_check_branch
      %11 = sbr.rel (0) target = $region5
    $region4: #{tpu_custom_call.1} parent=1 // pred_region
      %13 = vsyncadd [#allocation3], 0
      %s14 = sshll.u32 %s0, 4
      %s15 = int_to_ptr.hbm [resolvable:$true] %s14
      %s16 = sshll.u32 [#allocation2], 4
      %s17 = int_to_ptr.vmem [resolvable:$true] %s16
      %22 = dma.hbm_to_vmem [thread:$0]  %s15, 128, %s17, [#allocation3], 64, 64, 4
    $region5: #{tpu_custom_call.1} parent=1 // pred_fallthru
      _
    // Predicated region
    $region6: #{tpu_custom_call.1} parent=1 // pred_check
      _
    $region7: #{tpu_custom_call.1} parent=1 // pred_check_branch
      %24 = sbr.rel (0) target = $region9
    $region8: #{tpu_custom_call.1} parent=1 // pred_region
      %26 = vsyncadd [#allocation6], 0
      %s28 = sshll.u32 %s1, 4
      %s29 = int_to_ptr.hbm [resolvable:$true] %s28
      %s30 = sshll.u32 [#allocation5], 4
      %s31 = int_to_ptr.vmem [resolvable:$true] %s30
      %33 = dma.hbm_to_vmem [thread:$0]  %s29, 16, %s31, [#allocation6]
    $region9: #{tpu_custom_call.1} parent=1 // pred_fallthru
      _
    // Predicated region
    $region10: #{tpu_custom_call.1} parent=1 // pred_check
      _
    $region11: #{tpu_custom_call.1} parent=1 // pred_check_branch
      %35 = sbr.rel (0) target = $region13
    $region12: #{tpu_custom_call.1} parent=1 // pred_region
      %37 = dma.done [#allocation3], 128
    $region13: #{tpu_custom_call.1} parent=1 // pred_fallthru
      _
    // Predicated region
    $region14: #{tpu_custom_call.1} parent=1 // pred_check
      _
    $region15: #{tpu_custom_call.1} parent=1 // pred_check_branch
      %39 = sbr.rel (0) target = $region17
    $region16: #{tpu_custom_call.1} parent=1 // pred_region
      %41 = dma.done [#allocation6], 16
    $region17: #{tpu_custom_call.1} parent=1 // pred_fallthru
      _
    %v42 = vld [vmem:[#allocation2] sm:$0xf]
    %v43 = vld [vmem:[#allocation2 + $0x4] sm:$0xf]
    %v44 = vunpack.c.l.bf16 %v42
    %v45 = vunpack.c.l.bf16 %v43
    %v46 = vmul.f32 %v44, %v44
    %v47 = vmul.f32 %v45, %v45
    %vm48 = vcmask 261120
    %v49 = vsel %vm48, %v46, 0.0
    %50 = vadd.xlane.f32.xlu0 %v49
    %v51 = vpop.xlane.xlu0 %50
    %v52 = vsel %vm48, %v47, 0.0
    %53 = vadd.xlane.f32.xlu0 %v52
    %v54 = vpop.xlane.xlu0 %53
    %v55 = vmul.f32 %v51, 0.03125
    %v56 = vmul.f32 %v54, 0.03125
    %v57 = vadd.f32 %v55, 1e-06
    %v58 = vadd.f32 %v56, 1e-06
    %v59 = vrsqrt.pop %v57
    %v60 = vmul.f32 %v59, %v57
    %v61 = vmul.f32 %v60, %v59
    %v62 = vmul.f32 0.5, %v61
    %v63 = vsub.f32 1.5, %v62
    %v64 = vmul.f32 %v59, %v63
    %vm65 = vweird.f32 %v57
    %vm66 = vweird.f32 %v59
    %vm67 = vmor %vm65, %vm66
    %v68 = vsel %vm67, %v59, %v64
    %v69 = vrsqrt.pop %v58
    %v70 = vmul.f32 %v69, %v58
    %v71 = vmul.f32 %v70, %v69
    %v72 = vmul.f32 0.5, %v71
    %v73 = vsub.f32 1.5, %v72
    %v74 = vmul.f32 %v69, %v73
    %vm75 = vweird.f32 %v58
    %vm76 = vweird.f32 %v69
    %vm77 = vmor %vm75, %vm76
    %v78 = vsel %vm77, %v69, %v74
    %v79 = vmul.f32 %v44, %v68
    %v80 = vmul.f32 %v45, %v78
    %v81 = vld [vmem:[#allocation5] sm:$0x1]
    %v83 = vperm.slane %v81, 0
    %v85 = vmul.f32 %v79, %v83
    %v86 = vmul.f32 %v80, %v83
    %v87 = vpack.c.bf16 %v85, %v85
    %v88 = vpack.c.bf16 %v86, %v86
    %vm89 = vcmask 257024
    %90 = vst.msk [vmem:[#allocation7] sm:$0xf] %vm89, %v87
    %91 = vst.msk [vmem:[#allocation7 + $0x4] sm:$0xf] %vm89, %v88
    // Predicated region
    $region18: #{tpu_custom_call.1} parent=1 // pred_check
      _
    $region19: #{tpu_custom_call.1} parent=1 // pred_check_branch
      %93 = sbr.rel (0) target = $region21
    $region20: #{tpu_custom_call.1} parent=1 // pred_region
      %95 = vsyncadd [#allocation4], 0
      %s96 = sshll.u32 [#allocation7], 4
      %s97 = int_to_ptr.vmem [resolvable:$true] %s96
      %s98 = sshll.u32 %s2, 4
      %s99 = int_to_ptr.hbm [resolvable:$true] %s98
      %104 = dma.vmem_to_hbm [thread:$0]  %s97, 128, %s99, [#allocation4], 64, 64, 4
    $region21: #{tpu_custom_call.1} parent=1 // pred_fallthru
      _
    // Predicated region
    $region22: #{tpu_custom_call.1} parent=1 // pred_check
      _
    $region23: #{tpu_custom_call.1} parent=1 // pred_check_branch
      %106 = sbr.rel (0) target = $region25
    $region24: #{tpu_custom_call.1} parent=1 // pred_region
      %108 = dma.done [#allocation4], 128
    $region25: #{tpu_custom_call.1} parent=1 // pred_fallthru
      _
    %109 = vsyncpa [#allocation3], 1
    %110 = vsyncpa [#allocation6], 1
    %111 = vsyncpa [#allocation4], 1

</llo_original>
